<compile_context>
chip_gen: v6e
topology: v6e:2x2x1
jax: 0.10.0
libtpu: 0.0.40
codegen_flags: <defaults>
</compile_context>

<pallas_src>
import jax
import jax.numpy as jnp
from jax.experimental import pallas as pl
from jax.experimental.pallas import tpu as pltpu


def _ceil8(n: int) -> int:
    return -(-n // 8) * 8


def _make_kernel(obs_size, hidden_fused, n_actions,
                 w1_off, w2_off, w3_off, b1_off, b2_off, b3_off):
    H = hidden_fused

    def kernel(obs_ref, params_ref, out_ref):
        x = obs_ref[...]                                        # [B, obs]

        # Static, sublane-aligned slices of the packed parameter slab.
        w1 = params_ref[w1_off:w1_off + obs_size, :]            # [obs, H]
        w2 = params_ref[w2_off:w2_off + H, :]                   # [H, H] block-diag
        w3 = params_ref[w3_off:w3_off + H, :]                   # [H, H] (cols >= n_actions+1 are 0)
        b1 = params_ref[b1_off:b1_off + 1, :]                   # [1, H]
        b2 = params_ref[b2_off:b2_off + 1, :]
        b3 = params_ref[b3_off:b3_off + 1, :]

        # Fused pi+value MLP: 3 matmuls total.
        h = jnp.tanh(jnp.dot(x, w1, preferred_element_type=jnp.float32) + b1)
        h = jnp.tanh(jnp.dot(h, w2, preferred_element_type=jnp.float32) + b2)
        out = jnp.dot(h, w3, preferred_element_type=jnp.float32) + b3  # [B, H]
        # cols 0:n_actions = pi logits, col n_actions = value, rest = 0.

        # Masked softmax over the logit columns only.
        col = jax.lax.broadcasted_iota(jnp.int32, out.shape, 1)
        is_logit = col < n_actions
        logits = jnp.where(is_logit, out, -jnp.inf)
        m = jnp.max(logits, axis=-1, keepdims=True)
        e = jnp.exp(logits - m)                                 # 0 outside logit cols
        s = jnp.sum(e, axis=-1, keepdims=True)
        probs = e * pl.reciprocal(s, approx=True)

        # Single full-block store: probs in cols 0:n_actions, value in col n_actions.
        out_ref[...] = jnp.where(col == n_actions, out, probs)

    return kernel


def _pack_params(pi_params, value_params, obs_size, n_actions):
    """Fuse the two MLPs and pack everything into one [rows, H] f32 slab.

    Each section starts at a sublane-aligned (multiple-of-8) row offset.
    Returns (slab, offsets, H).
    """
    pw1, pb1, pw2, pb2, pw3, pb3 = pi_params
    vw1, vb1, vw2, vb2, vw3, vb3 = value_params
    hp = pw1.shape[1]
    hv = vw1.shape[1]
    H = hp + hv

    w1f = jnp.concatenate([pw1, vw1], axis=1)                    # [obs, H]
    b1f = jnp.concatenate([pb1, vb1], axis=1)                    # [1, H]

    w2f = jnp.zeros((H, H), jnp.float32)
    w2f = w2f.at[:hp, :hp].set(pw2).at[hp:, hp:].set(vw2)        # block-diagonal
    b2f = jnp.concatenate([pb2, vb2], axis=1)

    w3f = jnp.zeros((H, H), jnp.float32)
    w3f = w3f.at[:hp, :n_actions].set(pw3)
    w3f = w3f.at[hp:, n_actions:n_actions + 1].set(vw3)
    b3f = jnp.zeros((1, H), jnp.float32)
    b3f = b3f.at[:, :n_actions].set(pb3)
    b3f = b3f.at[:, n_actions:n_actions + 1].set(vb3)

    sections = [
        (w1f, _ceil8(obs_size)),
        (w2f, _ceil8(H)),
        (w3f, _ceil8(H)),
        (b1f, 8),
        (b2f, 8),
        (b3f, 8),
    ]
    offsets = []
    padded = []
    row = 0
    for arr, rows in sections:
        offsets.append(row)
        padded.append(jnp.pad(arr, ((0, rows - arr.shape[0]), (0, 0))))
        row += rows
    slab = jnp.concatenate(padded, axis=0)                       # [row, H]
    return slab, tuple(offsets), H


def cartpole_ff_pg_forward(observation, pi_params, value_params):
    """observation: [B, obs_size] f32. Returns (probs [B, n_actions], value [B])."""
    assert observation.ndim == 2
    B, obs_size = observation.shape
    n_actions = pi_params[-1].shape[-1]

    slab, offsets, H = _pack_params(pi_params, value_params, obs_size, n_actions)
    kernel = _make_kernel(obs_size, H, n_actions, *offsets)

    vmem = pl.BlockSpec(memory_space=pltpu.MemorySpace.VMEM)
    fused = pl.pallas_call(
        kernel,
        out_shape=jax.ShapeDtypeStruct((B, H), jnp.float32),
        in_specs=[vmem, vmem],
        out_specs=vmem,
    )(observation, slab)

    probs = fused[:, :n_actions]
    value = fused[:, n_actions]          # .squeeze(-1) from the PyTorch forward
    return probs, value


def _init_mlp_params(key, sizes):
    """Mimic PyTorch nn.Linear default init (U[-1/sqrt(fan_in), 1/sqrt(fan_in)]).

    Returns flat tuple (W1, b1, W2, b2, W3, b3) with W as [in, out], b as [1, out].
    """
    params = []
    for i in range(len(sizes) - 1):
        fan_in, fan_out = sizes[i], sizes[i + 1]
        key, kw, kb = jax.random.split(key, 3)
        bound = 1.0 / (fan_in ** 0.5)
        w = jax.random.uniform(kw, (fan_in, fan_out), jnp.float32, -bound, bound)
        b = jax.random.uniform(kb, (1, fan_out), jnp.float32, -bound, bound)
        params += [w, b]
    return tuple(params)


def _reference_forward(observation, pi_params, value_params):
    def mlp(params):
        w1, b1, w2, b2, w3, b3 = params
        h = jnp.tanh(observation @ w1 + b1)
        h = jnp.tanh(h @ w2 + b2)
        return h @ w3 + b3

    probs = jax.nn.softmax(mlp(pi_params), axis=-1)
    value = mlp(value_params)[:, 0]
    return probs, value


if __name__ == "__main__":
    # CartPole: obs_space = Box(shape=(4,)), action_space = Discrete(2),
    # hidden_sizes = [32, 32], hidden_nonlinearity = "Tanh".
    OBS_SIZE = 4
    N_ACTIONS = 2
    HIDDEN = [32, 32]
    BATCH = 8

    key = jax.random.PRNGKey(0)
    k_obs, k_pi, k_val = jax.random.split(key, 3)

    observation = jax.random.normal(k_obs, (BATCH, OBS_SIZE), jnp.float32)
    pi_params = _init_mlp_params(k_pi, [OBS_SIZE] + HIDDEN + [N_ACTIONS])
    value_params = _init_mlp_params(k_val, [OBS_SIZE] + HIDDEN + [1])

    probs, value = jax.jit(cartpole_ff_pg_forward)(observation, pi_params, value_params)
    jax.block_until_ready((probs, value))

    assert probs.shape == (BATCH, N_ACTIONS)
    assert value.shape == (BATCH,)

    # Check against a pure-JAX reference (tolerance relaxed for approx reciprocal).
    ref_probs, ref_value = _reference_forward(observation, pi_params, value_params)
    assert bool(jnp.all(jnp.abs(probs - ref_probs) < 5e-3))
    assert bool(jnp.all(jnp.abs(value - ref_value) < 1e-4))
    # softmax rows sum to ~1 (approx reciprocal -> relaxed tolerance)
    assert bool(jnp.all(jnp.abs(jnp.sum(probs, axis=-1) - 1.0) < 5e-3))

    print("KERNEL_OK")
</pallas_src>

<mosaic_0001>
module attributes {stable_mosaic.version = 11 : i64} {
  func.func @kernel(%arg0: memref<8x4xf32, #tpu.memory_space<vmem>>, %arg1: memref<160x64xf32, #tpu.memory_space<vmem>>, %arg2: memref<8x64xf32, #tpu.memory_space<vmem>>) attributes {dimension_semantics = [], scalar_prefetch = 0 : i64, scratch_operands = 0 : i64, tpu.core_type = #tpu.core_type<tc>} {
    %c0 = arith.constant 0 : index
    %c0_0 = arith.constant 0 : index
    %0 = vector.load %arg0[%c0, %c0_0] : memref<8x4xf32, #tpu.memory_space<vmem>>, vector<8x4xf32>
    %c0_1 = arith.constant 0 : index
    %c0_2 = arith.constant 0 : index
    %1 = vector.load %arg1[%c0_1, %c0_2] : memref<160x64xf32, #tpu.memory_space<vmem>>, vector<4x64xf32>
    %c8 = arith.constant 8 : index
    %c0_3 = arith.constant 0 : index
    %2 = vector.load %arg1[%c8, %c0_3] : memref<160x64xf32, #tpu.memory_space<vmem>>, vector<64x64xf32>
    %c72 = arith.constant 72 : index
    %c0_4 = arith.constant 0 : index
    %3 = vector.load %arg1[%c72, %c0_4] : memref<160x64xf32, #tpu.memory_space<vmem>>, vector<64x64xf32>
    %c136 = arith.constant 136 : index
    %c0_5 = arith.constant 0 : index
    %4 = vector.load %arg1[%c136, %c0_5] : memref<160x64xf32, #tpu.memory_space<vmem>>, vector<1x64xf32>
    %c144 = arith.constant 144 : index
    %c0_6 = arith.constant 0 : index
    %5 = vector.load %arg1[%c144, %c0_6] : memref<160x64xf32, #tpu.memory_space<vmem>>, vector<1x64xf32>
    %c152 = arith.constant 152 : index
    %c0_7 = arith.constant 0 : index
    %6 = vector.load %arg1[%c152, %c0_7] : memref<160x64xf32, #tpu.memory_space<vmem>>, vector<1x64xf32>
    %cst = arith.constant dense<0.000000e+00> : vector<8x64xf32>
    %7 = tpu.matmul %0, %1, %cst {dimension_numbers = #tpu.dot_dimension_numbers<[1], [0], [0], [1], [0, 0, 1, 1], [], []>} : vector<8x4xf32>, vector<4x64xf32>, vector<8x64xf32> -> vector<8x64xf32>
    %8 = vector.broadcast %4 : vector<1x64xf32> to vector<8x64xf32>
    %9 = arith.addf %7, %8 : vector<8x64xf32>
    %10 = math.tanh %9 : vector<8x64xf32>
    %cst_8 = arith.constant dense<0.000000e+00> : vector<8x64xf32>
    %11 = tpu.matmul %10, %2, %cst_8 {dimension_numbers = #tpu.dot_dimension_numbers<[1], [0], [0], [1], [0, 0, 1, 1], [], []>} : vector<8x64xf32>, vector<64x64xf32>, vector<8x64xf32> -> vector<8x64xf32>
    %12 = vector.broadcast %5 : vector<1x64xf32> to vector<8x64xf32>
    %13 = arith.addf %11, %12 : vector<8x64xf32>
    %14 = math.tanh %13 : vector<8x64xf32>
    %cst_9 = arith.constant dense<0.000000e+00> : vector<8x64xf32>
    %15 = tpu.matmul %14, %3, %cst_9 {dimension_numbers = #tpu.dot_dimension_numbers<[1], [0], [0], [1], [0, 0, 1, 1], [], []>} : vector<8x64xf32>, vector<64x64xf32>, vector<8x64xf32> -> vector<8x64xf32>
    %16 = vector.broadcast %6 : vector<1x64xf32> to vector<8x64xf32>
    %17 = arith.addf %15, %16 : vector<8x64xf32>
    %18 = tpu.iota {dimensions = array<i32: 1>} : vector<8x64xi32>
    %c2_i32 = arith.constant 2 : i32
    %19 = vector.broadcast %c2_i32 : i32 to vector<8x64xi32>
    %20 = arith.cmpi slt, %18, %19 : vector<8x64xi32>
    %cst_10 = arith.constant 0xFF800000 : f32
    %21 = vector.broadcast %cst_10 : f32 to vector<8x64xf32>
    %22 = arith.select %20, %17, %21 : vector<8x64xi1>, vector<8x64xf32>
    %cst_11 = arith.constant dense<0xFF800000> : vector<8xf32>
    %23 = vector.multi_reduction <maximumf>, %22, %cst_11 [1] : vector<8x64xf32> to vector<8xf32>
    %24 = vector.shape_cast %23 : vector<8xf32> to vector<8x1xf32>
    %25 = vector.broadcast %24 : vector<8x1xf32> to vector<8x64xf32>
    %26 = arith.subf %22, %25 : vector<8x64xf32>
    %27 = math.exp %26 : vector<8x64xf32>
    %cst_12 = arith.constant dense<0.000000e+00> : vector<8xf32>
    %28 = vector.multi_reduction <add>, %27, %cst_12 [1] : vector<8x64xf32> to vector<8xf32>
    %29 = vector.shape_cast %28 : vector<8xf32> to vector<8x1xf32>
    %30 = tpu.reciprocal %29 {approx = true} : vector<8x1xf32> -> vector<8x1xf32>
    %31 = vector.broadcast %30 : vector<8x1xf32> to vector<8x64xf32>
    %32 = arith.mulf %27, %31 : vector<8x64xf32>
    %c2_i32_13 = arith.constant 2 : i32
    %33 = vector.broadcast %c2_i32_13 : i32 to vector<8x64xi32>
    %34 = arith.cmpi eq, %18, %33 : vector<8x64xi32>
    %35 = arith.select %34, %17, %32 : vector<8x64xi1>, vector<8x64xf32>
    %c0_14 = arith.constant 0 : index
    %c0_15 = arith.constant 0 : index
    %36 = vector.load %arg2[%c0_14, %c0_15] : memref<8x64xf32, #tpu.memory_space<vmem>>, vector<8x64xf32>
    tpu.vector_store %arg2[%c0_14, %c0_15], %35 {strides = array<i32>} : memref<8x64xf32, #tpu.memory_space<vmem>>, vector<8x64xf32>,
    return
  }
}

</mosaic_0001>

<llo_original>
// kernel: cartpole_ff_pg_forward.1
$region0: #{cartpole_ff_pg_forward.1}
  #allocation0 [shape = 'u32[]', space=smem, size = 0x4, offset = 0x4, fixed_abs, tag = 'smem constant byte address 0x4 - core index']
  #allocation1 [shape = 'u32[144,128]{1,0:T(1,128)}', space=vmem, size = 0x12000, scoped, tag = 'internal scratch']
  %s0 = inlined_call_operand.vmem [shape: f32[8,4], index: 0, kind: input, shape index: {}]
  %s1 = inlined_call_operand.vmem [shape: f32[160,64], index: 1, kind: input, shape index: {}]
  %s2 = inlined_call_operand.vmem [shape: f32[8,64], index: 2, kind: output, shape index: {}]
  %s3 = sld [smem:[#allocation0]]
  $region18: #{cartpole_ff_pg_forward.1} parent=0
    _
  %s5 = ssub.s32 1, %s3
  %s6 = scalar_select 0, %s5, %s3
  // Predicated region
  $region2: #{cartpole_ff_pg_forward.1} parent=0 // pred_check
    _
  $region3: #{cartpole_ff_pg_forward.1} parent=0 // pred_check_branch
    %8 = sbr.rel (0) target = $region5
  $region4: #{cartpole_ff_pg_forward.1} parent=0 // pred_region
    _
  $region5: #{cartpole_ff_pg_forward.1} parent=0 // pred_fallthru
    _
  // Predicated region
  $region6: #{cartpole_ff_pg_forward.1} parent=0 // pred_check
    _
  $region7: #{cartpole_ff_pg_forward.1} parent=0 // pred_check_branch
    %10 = sbr.rel (0) target = $region9
  $region8: #{cartpole_ff_pg_forward.1} parent=0 // pred_region
    _
  $region9: #{cartpole_ff_pg_forward.1} parent=0 // pred_fallthru
    _
  %v11 = vld [vmem:[%s0] sm:$0xff]
  %v12 = vld [vmem:[%s1] sm:$0xf]
  %v13 = vld [vmem:[%s1 + $0x8] sm:$0xff]
  %v14 = vld [vmem:[%s1 + $0x10] sm:$0xff]
  %v15 = vld [vmem:[%s1 + $0x18] sm:$0xff]
  %v16 = vld [vmem:[%s1 + $0x20] sm:$0xff]
  %v17 = vld [vmem:[%s1 + $0x28] sm:$0xff]
  %v18 = vld [vmem:[%s1 + $0x30] sm:$0xff]
  %v19 = vld [vmem:[%s1 + $0x38] sm:$0xff]
  %v20 = vld [vmem:[%s1 + $0x40] sm:$0xff]
  %v21 = vld [vmem:[%s1 + $0x48] sm:$0xff]
  %v22 = vld [vmem:[%s1 + $0x50] sm:$0xff]
  %v23 = vld [vmem:[%s1 + $0x58] sm:$0xff]
  %v24 = vld [vmem:[%s1 + $0x60] sm:$0xff]
  %v25 = vld [vmem:[%s1 + $0x68] sm:$0xff]
  %v26 = vld [vmem:[%s1 + $0x70] sm:$0xff]
  %v27 = vld [vmem:[%s1 + $0x78] sm:$0xff]
  %v28 = vld [vmem:[%s1 + $0x80] sm:$0xff]
  %v29 = vld [vmem:[%s1 + $0x88] sm:$0x1]
  %v30 = vld [vmem:[%s1 + $0x90] sm:$0x1]
  %v31 = vld [vmem:[%s1 + $0x98] sm:$0x1]
  %v32 = vlaneseq
  %v33 = vshrl.u32 %v32, 7
  %v34 = vsub.s32 0, %v33
  %v35 = vrot.slane %v29, %v34
  %vm36 = vcmask 31744
  %v38 = vsel %vm36, %v11, 0
  %vm40 = vcmask 1043456
  %v42 = vsel %vm40, %v12, 0
  %44 = vmatprep.subr.mxu0 0.0
  %45 = vmatpush1.msra.mxu0 0.0
  %46 = vmatprep.subr.mxu0 0.0
  %47 = vmatpush1.msra.mxu0 0.0
  %48 = vmatprep.subr.mxu0 0.0
  %49 = vmatpush1.msra.mxu0 0.0
  %50 = vmatprep.subr.mxu0 0.0
  %51 = vmatpush1.msra.mxu0 0.0
  %52 = vmatprep.subr.mxu0 0.0
  %53 = vmatpush1.msra.mxu0 0.0
  %54 = vmatprep.subr.mxu0 0.0
  %55 = vmatpush1.msra.mxu0 0.0
  %56 = vmatprep.subr.mxu0 0.0
  %57 = vmatpush1.msra.mxu0 0.0
  %58 = vmatprep.subr.mxu0 0.0
  %59 = vmatpush1.msra.mxu0 0.0
  %60 = vmatprep.subr.mxu0 0.0
  %61 = vmatpush1.msra.mxu0 0.0
  %62 = vmatprep.subr.mxu0 0.0
  %63 = vmatpush1.msra.mxu0 0.0
  %64 = vmatprep.subr.mxu0 0.0
  %65 = vmatpush1.msra.mxu0 0.0
  %66 = vmatprep.subr.mxu0 0.0
  %67 = vmatpush1.msra.mxu0 0.0
  %68 = vmatprep.subr.mxu0 0.0
  %69 = vmatpush1.msra.mxu0 0.0
  %70 = vmatprep.subr.mxu0 0.0
  %71 = vmatpush1.msra.mxu0 0.0
  %72 = vmatprep.subr.mxu0 0.0
  %73 = vmatpush1.msra.mxu0 0.0
  %74 = vmatprep.subr.mxu0 0.0
  %75 = vmatpush1.msra.mxu0 %v42
  %76 = vmatprep.subr.mxu0 0.0
  %77 = vmatpush2.msra.mxu0 0.0
  %78 = vmatprep.subr.mxu0 0.0
  %79 = vmatpush2.msra.mxu0 0.0
  %80 = vmatprep.subr.mxu0 0.0
  %81 = vmatpush2.msra.mxu0 0.0
  %82 = vmatprep.subr.mxu0 0.0
  %83 = vmatpush2.msra.mxu0 0.0
  %84 = vmatprep.subr.mxu0 0.0
  %85 = vmatpush2.msra.mxu0 0.0
  %86 = vmatprep.subr.mxu0 0.0
  %87 = vmatpush2.msra.mxu0 0.0
  %88 = vmatprep.subr.mxu0 0.0
  %89 = vmatpush2.msra.mxu0 0.0
  %90 = vmatprep.subr.mxu0 0.0
  %91 = vmatpush2.msra.mxu0 0.0
  %92 = vmatprep.subr.mxu0 0.0
  %93 = vmatpush2.msra.mxu0 0.0
  %94 = vmatprep.subr.mxu0 0.0
  %95 = vmatpush2.msra.mxu0 0.0
  %96 = vmatprep.subr.mxu0 0.0
  %97 = vmatpush2.msra.mxu0 0.0
  %98 = vmatprep.subr.mxu0 0.0
  %99 = vmatpush2.msra.mxu0 0.0
  %100 = vmatprep.subr.mxu0 0.0
  %101 = vmatpush2.msra.mxu0 0.0
  %102 = vmatprep.subr.mxu0 0.0
  %103 = vmatpush2.msra.mxu0 0.0
  %104 = vmatprep.subr.mxu0 0.0
  %105 = vmatpush2.msra.mxu0 0.0
  %106 = vmatprep.subr.mxu0 0.0
  %107 = vmatpush2.msra.mxu0 0.0
  %108 = vmatprep.mubr.f32.mxu0 0.0
  %109 = vmatmul.mubr.f32.gmra.mxu0 %v38
  %v110 = vpop.f32.mrf.mxu0
  %v111 = vadd.f32 %v35, %v110
  %v112 = vpop.f32.mrf.mxu0
  %113 = vdwg.mxu0
  %v114 = vtanh.pop %v111
  %v115 = vlaneseq
  %v116 = vshrl.u32 %v115, 7
  %v117 = vsub.s32 0, %v116
  %v118 = vrot.slane %v30, %v117
  %vm119 = vcmask 523264
  %v121 = vsel %vm119, %v114, 0
  %123 = vmatprep.subr.mxu0 0.0
  %124 = vmatpush1.msra.mxu0 0.0
  %125 = vmatprep.subr.mxu0 0.0
  %126 = vmatpush1.msra.mxu0 0.0
  %127 = vmatprep.subr.mxu0 0.0
  %128 = vmatpush1.msra.mxu0 0.0
  %129 = vmatprep.subr.mxu0 0.0
  %130 = vmatpush1.msra.mxu0 0.0
  %131 = vmatprep.subr.mxu0 0.0
  %132 = vmatpush1.msra.mxu0 0.0
  %133 = vmatprep.subr.mxu0 0.0
  %134 = vmatpush1.msra.mxu0 0.0
  %135 = vmatprep.subr.mxu0 0.0
  %136 = vmatpush1.msra.mxu0 0.0
  %137 = vmatprep.subr.mxu0 0.0
  %138 = vmatpush1.msra.mxu0 0.0
  %139 = vmatprep.subr.mxu0 0.0
  %140 = vmatpush1.msra.mxu0 %v20
  %141 = vmatprep.subr.mxu0 0.0
  %142 = vmatpush1.msra.mxu0 %v19
  %143 = vmatprep.subr.mxu0 0.0
  %144 = vmatpush1.msra.mxu0 %v18
  %145 = vmatprep.subr.mxu0 0.0
  %146 = vmatpush1.msra.mxu0 %v17
  %147 = vmatprep.subr.mxu0 0.0
  %148 = vmatpush1.msra.mxu0 %v16
  %149 = vmatprep.subr.mxu0 0.0
  %150 = vmatpush1.msra.mxu0 %v15
  %151 = vmatprep.subr.mxu0 0.0
  %152 = vmatpush1.msra.mxu0 %v14
  %153 = vmatprep.subr.mxu0 0.0
  %154 = vmatpush1.msra.mxu0 %v13
  %155 = vmatprep.subr.mxu0 0.0
  %156 = vmatpush2.msra.mxu0 0.0
  %157 = vmatprep.subr.mxu0 0.0
  %158 = vmatpush2.msra.mxu0 0.0
  %159 = vmatprep.subr.mxu0 0.0
  %160 = vmatpush2.msra.mxu0 0.0
  %161 = vmatprep.subr.mxu0 0.0
  %162 = vmatpush2.msra.mxu0 0.0
  %163 = vmatprep.subr.mxu0 0.0
  %164 = vmatpush2.msra.mxu0 0.0
  %165 = vmatprep.subr.mxu0 0.0
  %166 = vmatpush2.msra.mxu0 0.0
  %167 = vmatprep.subr.mxu0 0.0
  %168 = vmatpush2.msra.mxu0 0.0
  %169 = vmatprep.subr.mxu0 0.0
  %170 = vmatpush2.msra.mxu0 0.0
  %171 = vmatprep.subr.mxu0 0.0
  %172 = vmatpush2.msra.mxu0 0.0
  %173 = vmatprep.subr.mxu0 0.0
  %174 = vmatpush2.msra.mxu0 0.0
  %175 = vmatprep.subr.mxu0 0.0
  %176 = vmatpush2.msra.mxu0 0.0
  %177 = vmatprep.subr.mxu0 0.0
  %178 = vmatpush2.msra.mxu0 0.0
  %179 = vmatprep.subr.mxu0 0.0
  %180 = vmatpush2.msra.mxu0 0.0
  %181 = vmatprep.subr.mxu0 0.0
  %182 = vmatpush2.msra.mxu0 0.0
  %183 = vmatprep.subr.mxu0 0.0
  %184 = vmatpush2.msra.mxu0 0.0
  %185 = vmatprep.subr.mxu0 0.0
  %186 = vmatpush2.msra.mxu0 0.0
  %187 = vmatprep.mubr.f32.mxu0 0.0
  %188 = vmatmul.mubr.f32.gmra.mxu0 %v121
  %v189 = vpop.f32.mrf.mxu0
  %v190 = vadd.f32 %v118, %v189
  %v191 = vpop.f32.mrf.mxu0
  %192 = vdwg.mxu0
  %v193 = vtanh.pop %v190
  %v194 = vlaneseq
  %v195 = vshrl.u32 %v194, 7
  %v196 = vsub.s32 0, %v195
  %v197 = vrot.slane %v31, %v196
  %v199 = vsel %vm119, %v193, 0
  %201 = vmatprep.subr.mxu0 0.0
  %202 = vmatpush1.msra.mxu0 0.0
  %203 = vmatprep.subr.mxu0 0.0
  %204 = vmatpush1.msra.mxu0 0.0
  %205 = vmatprep.subr.mxu0 0.0
  %206 = vmatpush1.msra.mxu0 0.0
  %207 = vmatprep.subr.mxu0 0.0
  %208 = vmatpush1.msra.mxu0 0.0
  %209 = vmatprep.subr.mxu0 0.0
  %210 = vmatpush1.msra.mxu0 0.0
  %211 = vmatprep.subr.mxu0 0.0
  %212 = vmatpush1.msra.mxu0 0.0
  %213 = vmatprep.subr.mxu0 0.0
  %214 = vmatpush1.msra.mxu0 0.0
  %215 = vmatprep.subr.mxu0 0.0
  %216 = vmatpush1.msra.mxu0 0.0
  %217 = vmatprep.subr.mxu0 0.0
  %218 = vmatpush1.msra.mxu0 %v28
  %219 = vmatprep.subr.mxu0 0.0
  %220 = vmatpush1.msra.mxu0 %v27
  %221 = vmatprep.subr.mxu0 0.0
  %222 = vmatpush1.msra.mxu0 %v26
  %223 = vmatprep.subr.mxu0 0.0
  %224 = vmatpush1.msra.mxu0 %v25
  %225 = vmatprep.subr.mxu0 0.0
  %226 = vmatpush1.msra.mxu0 %v24
  %227 = vmatprep.subr.mxu0 0.0
  %228 = vmatpush1.msra.mxu0 %v23
  %229 = vmatprep.subr.mxu0 0.0
  %230 = vmatpush1.msra.mxu0 %v22
  %231 = vmatprep.subr.mxu0 0.0
  %232 = vmatpush1.msra.mxu0 %v21
  %233 = vmatprep.subr.mxu0 0.0
  %234 = vmatpush2.msra.mxu0 0.0
  %235 = vmatprep.subr.mxu0 0.0
  %236 = vmatpush2.msra.mxu0 0.0
  %237 = vmatprep.subr.mxu0 0.0
  %238 = vmatpush2.msra.mxu0 0.0
  %239 = vmatprep.subr.mxu0 0.0
  %240 = vmatpush2.msra.mxu0 0.0
  %241 = vmatprep.subr.mxu0 0.0
  %242 = vmatpush2.msra.mxu0 0.0
  %243 = vmatprep.subr.mxu0 0.0
  %244 = vmatpush2.msra.mxu0 0.0
  %245 = vmatprep.subr.mxu0 0.0
  %246 = vmatpush2.msra.mxu0 0.0
  %247 = vmatprep.subr.mxu0 0.0
  %248 = vmatpush2.msra.mxu0 0.0
  %249 = vmatprep.subr.mxu0 0.0
  %250 = vmatpush2.msra.mxu0 0.0
  %251 = vmatprep.subr.mxu0 0.0
  %252 = vmatpush2.msra.mxu0 0.0
  %253 = vmatprep.subr.mxu0 0.0
  %254 = vmatpush2.msra.mxu0 0.0
  %255 = vmatprep.subr.mxu0 0.0
  %256 = vmatpush2.msra.mxu0 0.0
  %257 = vmatprep.subr.mxu0 0.0
  %258 = vmatpush2.msra.mxu0 0.0
  %259 = vmatprep.subr.mxu0 0.0
  %260 = vmatpush2.msra.mxu0 0.0
  %261 = vmatprep.subr.mxu0 0.0
  %262 = vmatpush2.msra.mxu0 0.0
  %263 = vmatprep.subr.mxu0 0.0
  %264 = vmatpush2.msra.mxu0 0.0
  %265 = vmatprep.mubr.f32.mxu0 0.0
  %266 = vmatmul.mubr.f32.gmra.mxu0 %v199
  %v267 = vpop.f32.mrf.mxu0
  %v268 = vadd.f32 %v197, %v267
  %v269 = vpop.f32.mrf.mxu0
  %270 = vdwg.mxu0
  %v271 = vlaneseq
  %v272 = vand.u32 %v271, 127
  %vm273 = vcmp.lt.s32.totalorder %v272, 2
  %v274 = vsel %vm273, %v268, -inf
  %v275 = vsel %vm119, %v274, -inf
  %276 = vmax.xlane.f32.xlu0 %v275
  %v277 = vpop.xlane.xlu0 %276
  %v278 = vsub.f32 %v274, %v277
  %v279 = vmul.f32 %v278, 1.442695
  %v280 = vpow.pop %v279
  %v281 = vsel %vm119, %v280, 0.0
  %282 = vadd.xlane.f32.xlu0 %v281
  %v283 = vpop.xlane.xlu0 %282
  %v284 = vrcp.pop %v283
  %v285 = vmul.f32 %v280, %v284
  %vm286 = vcmp.eq.s32.totalorder %v272, 2
  %v287 = vsel %vm286, %v268, %v285
  %288 = vst.msk [vmem:[%s2] sm:$0xff] %vm119, %v287
  // Predicated region
  $region10: #{cartpole_ff_pg_forward.1} parent=0 // pred_check
    _
  $region11: #{cartpole_ff_pg_forward.1} parent=0 // pred_check_branch
    %290 = sbr.rel (0) target = $region13
  $region12: #{cartpole_ff_pg_forward.1} parent=0 // pred_region
    _
  $region13: #{cartpole_ff_pg_forward.1} parent=0 // pred_fallthru
    _
  // Predicated region
  $region14: #{cartpole_ff_pg_forward.1} parent=0 // pred_check
    _
  $region15: #{cartpole_ff_pg_forward.1} parent=0 // pred_check_branch
    %292 = sbr.rel (0) target = $region17
  $region16: #{cartpole_ff_pg_forward.1} parent=0 // pred_region
    _
  $region17: #{cartpole_ff_pg_forward.1} parent=0 // pred_fallthru
    _

</llo_original>
